<compile_context>
chip_gen: v6e
topology: v6e:2x2x1
jax: 0.10.0
libtpu: 0.0.40
codegen_flags: <defaults>
</compile_context>

<pallas_src>
import jax
import jax.numpy as jnp
from jax.experimental import pallas as pl
from jax.experimental.pallas import tpu as pltpu

IN_FEATURES = 28 * 28   # K = 784
OUT_FEATURES = 10       # N = 10
DEFAULT_TILE_B = 2048   # batch rows per grid step (amortizes ~0.35us/step)


def fc_relu_kernel(x_ref, w_ref, o_ref):
    # x_ref: (TB, 784) f32, w_ref: (784, 10) bf16, o_ref: (TB, 10) f32.
    x_bf = x_ref[...].astype(jnp.bfloat16)                 # VPU cast, hidden under x DMA
    y = jnp.dot(x_bf, w_ref[...],                          # MXU, f32 accumulation
                preferred_element_type=jnp.float32)
    o_ref[...] = jnp.maximum(y, 0.0).astype(o_ref.dtype)   # VPU ReLU


def _round_up(n, m):
    return ((n + m - 1) // m) * m


def simple_sample_convnet_forward(x, weight, *, tile_b=DEFAULT_TILE_B):
    """x: (B, 1, 28, 28) or (B, 784) float; weight: (10, 784) float (PyTorch layout)."""
    if x.ndim != 2:
        # NOTE: at large B prefer passing x pre-flattened as (B, 784); this
        # reshape can otherwise be a standalone relayout pass over x in XLA.
        x = x.reshape(x.shape[0], IN_FEATURES)
    b = x.shape[0]
    x = x.astype(jnp.float32)        # keep f32 here; the bf16 cast is in-kernel

    # One-time tiny (~15 KiB) prep: PyTorch (N, K) -> MXU-native (K, N), bf16.
    w_t = jnp.transpose(weight).astype(jnp.bfloat16)       # (784, 10)

    # Batch tile: full batch if tiny; otherwise a multiple of 8 capped at
    # ceil(b/2) so the grid always has >= 2 steps (engages both v7x TCs).
    if b <= 16:
        tb = b
    else:
        tb = min(max(8, (tile_b // 8) * 8), _round_up((b + 1) // 2, 8))
    grid = (pl.cdiv(b, tb),)

    cost = pl.CostEstimate(
        flops=2 * b * IN_FEATURES * OUT_FEATURES,
        transcendentals=0,
        bytes_accessed=(b * IN_FEATURES * 4                 # x (f32, dominant)
                        + IN_FEATURES * OUT_FEATURES * 2    # w (bf16, read once)
                        + b * OUT_FEATURES * 4),            # out (f32, unpadded)
    )

    return pl.pallas_call(
        fc_relu_kernel,
        out_shape=jax.ShapeDtypeStruct((b, OUT_FEATURES), jnp.float32),
        grid_spec=pltpu.PrefetchScalarGridSpec(
            num_scalar_prefetch=0,
            grid=grid,
            in_specs=[
                # x: one batch tile per step, double-buffered by Pallas.
                pl.BlockSpec((tb, IN_FEATURES), lambda i: (i, 0)),
                # w: constant index_map -> stays VMEM-resident across all steps.
                pl.BlockSpec((IN_FEATURES, OUT_FEATURES), lambda i: (0, 0)),
            ],
            out_specs=pl.BlockSpec((tb, OUT_FEATURES), lambda i: (i, 0)),
        ),
        compiler_params=pltpu.CompilerParams(
            # Independent batch tiles -> shardable across v7x's 2 TensorCores.
            dimension_semantics=("parallel",),
            # f32 x tiles (2 x ~6.3 MiB at tb=2048) exceed v5e's 16 MiB default
            # scoped VMEM; 48 MiB fits all generations (v7x physical = 64 MiB).
            vmem_limit_bytes=48 << 20,
        ),
        cost_estimate=cost,
    )(x, w_t)


if __name__ == "__main__":
    key = jax.random.PRNGKey(0)
    k_x, k_w = jax.random.split(key)

    # Small MNIST-shaped batch: (B, 1, 28, 28), NCHW like PyTorch.
    batch = 2
    x = jax.random.normal(k_x, (batch, 1, 28, 28), dtype=jnp.float32)

    # Deterministic init matching nn.Linear(784, 10, bias=False) weight (10, 784).
    bound = 1.0 / jnp.sqrt(jnp.float32(IN_FEATURES))
    weight = jax.random.uniform(
        k_w, (OUT_FEATURES, IN_FEATURES), dtype=jnp.float32,
        minval=-bound, maxval=bound,
    )

    out = simple_sample_convnet_forward(x, weight)
    jax.block_until_ready(out)

    # Reference with identical math: bf16 operands, f32 accumulation, ReLU.
    x_bf = x.reshape(batch, IN_FEATURES).astype(jnp.bfloat16)
    w_bf = weight.astype(jnp.bfloat16)
    ref = jnp.maximum(
        jnp.dot(x_bf, w_bf.T, preferred_element_type=jnp.float32), 0.0)

    assert out.shape == (batch, OUT_FEATURES)
    assert out.dtype == jnp.float32
    assert jnp.allclose(out, ref, atol=1e-3, rtol=1e-3)

    print("KERNEL_OK")
</pallas_src>

<mosaic_0001>
module attributes {stable_mosaic.version = 11 : i64} {
  func.func @fc_relu_kernel(%arg0: i32, %arg1: memref<2x784xf32, #tpu.memory_space<vmem>>, %arg2: memref<784x10xbf16, #tpu.memory_space<vmem>>, %arg3: memref<2x10xf32, #tpu.memory_space<vmem>>) attributes {dimension_semantics = [#tpu.dimension_semantics<parallel>], iteration_bounds = array<i64: 1>, scalar_prefetch = 0 : i64, scratch_operands = 0 : i64, tpu.core_type = #tpu.core_type<tc>, window_params = [{transform_indices = @transform_0, window_bounds = array<i64: 2, 784>}, {pipeline_mode = #tpu.pipeline_mode<synchronous>, transform_indices = @transform_1, window_bounds = array<i64: 784, 10>}, {transform_indices = @transform_2, window_bounds = array<i64: 2, 10>}]} {
    %c0 = arith.constant 0 : index
    %c0_0 = arith.constant 0 : index
    %0 = vector.load %arg1[%c0, %c0_0] : memref<2x784xf32, #tpu.memory_space<vmem>>, vector<2x784xf32>
    %1 = arith.truncf %0 : vector<2x784xf32> to vector<2x784xbf16>
    %c0_1 = arith.constant 0 : index
    %c0_2 = arith.constant 0 : index
    %2 = vector.load %arg2[%c0_1, %c0_2] : memref<784x10xbf16, #tpu.memory_space<vmem>>, vector<784x10xbf16>
    %cst = arith.constant dense<0.000000e+00> : vector<2x10xf32>
    %3 = tpu.matmul %1, %2, %cst {dimension_numbers = #tpu.dot_dimension_numbers<[1], [0], [0], [1], [0, 0, 1, 1], [], []>} : vector<2x784xbf16>, vector<784x10xbf16>, vector<2x10xf32> -> vector<2x10xf32>
    %cst_3 = arith.constant 0.000000e+00 : f32
    %4 = vector.broadcast %cst_3 : f32 to vector<2x10xf32>
    %5 = arith.maximumf %3, %4 : vector<2x10xf32>
    %c0_4 = arith.constant 0 : index
    %c0_5 = arith.constant 0 : index
    %6 = vector.load %arg3[%c0_4, %c0_5] : memref<2x10xf32, #tpu.memory_space<vmem>>, vector<2x10xf32>
    tpu.vector_store %arg3[%c0_4, %c0_5], %5 {strides = array<i32>} : memref<2x10xf32, #tpu.memory_space<vmem>>, vector<2x10xf32>,
    return
  }
  func.func @transform_0(%arg0: i32) -> (i32, i32) {
    %c0_i32 = arith.constant 0 : i32
    %c0_i32_0 = arith.constant 0 : i32
    return %arg0, %c0_i32 : i32, i32
  }
  func.func @transform_1(%arg0: i32) -> (i32, i32) {
    %c0_i32 = arith.constant 0 : i32
    %c0_i32_0 = arith.constant 0 : i32
    %c0_i32_1 = arith.constant 0 : i32
    return %c0_i32, %c0_i32_0 : i32, i32
  }
  func.func @transform_2(%arg0: i32) -> (i32, i32) {
    %c0_i32 = arith.constant 0 : i32
    %c0_i32_0 = arith.constant 0 : i32
    return %arg0, %c0_i32 : i32, i32
  }
}

</mosaic_0001>

<llo_original>
// kernel: tpu_custom_call.1
$region0: #{tpu_custom_call.1}
  #allocation0 [shape = 'u32[]', space=smem, size = 0x4, offset = 0x4, fixed_abs, tag = 'smem constant byte address 0x4 - core index']
  #allocation1 [shape = 'u32[144,128]{1,0:T(1,128)}', space=vmem, size = 0x12000, scoped, tag = 'internal scratch']
  %s0 = inlined_call_operand.vmem [shape: f32[2,784], index: 0, kind: input, shape index: {}]
  %s1 = inlined_call_operand.vmem [shape: bf16[784,10], index: 1, kind: input, shape index: {}]
  %s2 = inlined_call_operand.hbm [shape: f32[2,10], index: 2, kind: output, shape index: {}]
  %s3 = sld [smem:[#allocation0]]
  $region18: #{tpu_custom_call.1} parent=0
    _
  %s5 = ssub.s32 1, %s3
  %s6 = scalar_select 0, %s5, %s3
  $region1: #{tpu_custom_call.1} parent=0
    #allocation2 [shape = 'u8[1024]{0}', space=vmem, size = 0x400, scoped, tag = 'output window, operand 0, single buffered']
    #allocation3 [shape = 's32[1]{0}', space=sflag, size = 0x4, scoped, tag = 'scoped memory for tpu_custom_call.1']
    %7 = vsyncpa [#allocation3], 0
    // Predicated region
    $region2: #{tpu_custom_call.1} parent=1 // pred_check
      _
    $region3: #{tpu_custom_call.1} parent=1 // pred_check_branch
      %9 = sbr.rel (0) target = $region5
    $region4: #{tpu_custom_call.1} parent=1 // pred_region
      _
    $region5: #{tpu_custom_call.1} parent=1 // pred_fallthru
      _
    // Predicated region
    $region6: #{tpu_custom_call.1} parent=1 // pred_check
      _
    $region7: #{tpu_custom_call.1} parent=1 // pred_check_branch
      %11 = sbr.rel (0) target = $region9
    $region8: #{tpu_custom_call.1} parent=1 // pred_region
      _
    $region9: #{tpu_custom_call.1} parent=1 // pred_fallthru
      _
    %v13 = vld [vmem:[%s0] sm:$0xff]
    %v14 = vld [vmem:[%s0 + $0x8] sm:$0x3f]
    %v17 = vcombine.high %v13, %v13
    %v19 = vunpack.c.l.s4 1983009808
    %v20 = vunpack.c.0.s8 %v19
    %v21 = vlaneseq
    %v22 = vshrl.u32 %v21, 7
    %v23 = vsub.s32 %v20, %v22
    %v24 = vrot.slane %v13, %v23
    %v26 = vunpack.c.l.s4 1983009808
    %v27 = vunpack.c.0.s8 %v26
    %v28 = vlaneseq
    %v29 = vshrl.u32 %v28, 7
    %v30 = vsub.s32 %v27, %v29
    %v31 = vrot.slane %v17, %v30
    %v32 = vcombine.high %v24, %v24
    %v33 = vcombine.high %v31, %v31
    %v34 = vcombine.high %v14, %v14
    %v36 = vunpack.c.l.s4 1983009808
    %v37 = vunpack.c.0.s8 %v36
    %v38 = vlaneseq
    %v39 = vshrl.u32 %v38, 7
    %v40 = vsub.s32 %v37, %v39
    %v41 = vrot.slane %v14, %v40
    %v43 = vunpack.c.l.s4 1983009808
    %v44 = vunpack.c.0.s8 %v43
    %v45 = vlaneseq
    %v46 = vshrl.u32 %v45, 7
    %v47 = vsub.s32 %v44, %v46
    %v48 = vrot.slane %v34, %v47
    %v49 = vcombine.high %v41, %v41
    %v57 = vpack.c.bf16 %v24, %v24
    %v58 = vpack.c.bf16 %v32, %v32
    %v59 = vpack.c.bf16 %v31, %v31
    %v60 = vpack.c.bf16 %v33, %v33
    %v61 = vpack.c.bf16 %v41, %v41
    %v62 = vpack.c.bf16 %v49, %v49
    %v63 = vpack.c.bf16 %v48, %v48
    %v64 = vld [vmem:[%s1] sm:$0xf]
    %v65 = vld [vmem:[%s1 + $0x4] sm:$0xf]
    %v66 = vld [vmem:[%s1 + $0x8] sm:$0xf]
    %v67 = vld [vmem:[%s1 + $0xc] sm:$0xf]
    %v68 = vld [vmem:[%s1 + $0x10] sm:$0xf]
    %v69 = vld [vmem:[%s1 + $0x14] sm:$0xf]
    %v70 = vld [vmem:[%s1 + $0x18] sm:$0xf]
    %v71 = vld [vmem:[%s1 + $0x1c] sm:$0xf]
    %v72 = vld [vmem:[%s1 + $0x20] sm:$0xf]
    %v73 = vld [vmem:[%s1 + $0x24] sm:$0xf]
    %v74 = vld [vmem:[%s1 + $0x28] sm:$0xf]
    %v75 = vld [vmem:[%s1 + $0x2c] sm:$0xf]
    %v76 = vld [vmem:[%s1 + $0x30] sm:$0xf]
    %v77 = vld [vmem:[%s1 + $0x34] sm:$0xf]
    %v78 = vld [vmem:[%s1 + $0x38] sm:$0xf]
    %v79 = vld [vmem:[%s1 + $0x3c] sm:$0xf]
    %v80 = vld [vmem:[%s1 + $0x40] sm:$0xf]
    %v81 = vld [vmem:[%s1 + $0x44] sm:$0xf]
    %v82 = vld [vmem:[%s1 + $0x48] sm:$0xf]
    %v83 = vld [vmem:[%s1 + $0x4c] sm:$0xf]
    %v84 = vld [vmem:[%s1 + $0x50] sm:$0xf]
    %v85 = vld [vmem:[%s1 + $0x54] sm:$0xf]
    %v86 = vld [vmem:[%s1 + $0x58] sm:$0xf]
    %v87 = vld [vmem:[%s1 + $0x5c] sm:$0xf]
    %v88 = vld [vmem:[%s1 + $0x60] sm:$0xf]
    %v89 = vld [vmem:[%s1 + $0x64] sm:$0xf]
    %v90 = vld [vmem:[%s1 + $0x68] sm:$0xf]
    %v91 = vld [vmem:[%s1 + $0x6c] sm:$0xf]
    %v92 = vld [vmem:[%s1 + $0x70] sm:$0xf]
    %v93 = vld [vmem:[%s1 + $0x74] sm:$0xf]
    %v94 = vld [vmem:[%s1 + $0x78] sm:$0xf]
    %v95 = vld [vmem:[%s1 + $0x7c] sm:$0xf]
    %v96 = vld [vmem:[%s1 + $0x80] sm:$0xf]
    %v97 = vld [vmem:[%s1 + $0x84] sm:$0xf]
    %v98 = vld [vmem:[%s1 + $0x88] sm:$0xf]
    %v99 = vld [vmem:[%s1 + $0x8c] sm:$0xf]
    %v100 = vld [vmem:[%s1 + $0x90] sm:$0xf]
    %v101 = vld [vmem:[%s1 + $0x94] sm:$0xf]
    %v102 = vld [vmem:[%s1 + $0x98] sm:$0xf]
    %v103 = vld [vmem:[%s1 + $0x9c] sm:$0xf]
    %v104 = vld [vmem:[%s1 + $0xa0] sm:$0xf]
    %v105 = vld [vmem:[%s1 + $0xa4] sm:$0xf]
    %v106 = vld [vmem:[%s1 + $0xa8] sm:$0xf]
    %v107 = vld [vmem:[%s1 + $0xac] sm:$0xf]
    %v108 = vld [vmem:[%s1 + $0xb0] sm:$0xf]
    %v109 = vld [vmem:[%s1 + $0xb4] sm:$0xf]
    %v110 = vld [vmem:[%s1 + $0xb8] sm:$0xf]
    %v111 = vld [vmem:[%s1 + $0xbc] sm:$0xf]
    %v112 = vld [vmem:[%s1 + $0xc0] sm:$0xf]
    %v113 = vld [vmem:[%s1 + $0xc4] sm:$0xf]
    %v114 = vld [vmem:[%s1 + $0xc8] sm:$0xf]
    %v115 = vld [vmem:[%s1 + $0xcc] sm:$0xf]
    %v116 = vld [vmem:[%s1 + $0xd0] sm:$0xf]
    %v117 = vld [vmem:[%s1 + $0xd4] sm:$0xf]
    %v118 = vld [vmem:[%s1 + $0xd8] sm:$0xf]
    %v119 = vld [vmem:[%s1 + $0xdc] sm:$0xf]
    %v120 = vld [vmem:[%s1 + $0xe0] sm:$0xf]
    %v121 = vld [vmem:[%s1 + $0xe4] sm:$0xf]
    %v122 = vld [vmem:[%s1 + $0xe8] sm:$0xf]
    %v123 = vld [vmem:[%s1 + $0xec] sm:$0xf]
    %v124 = vld [vmem:[%s1 + $0xf0] sm:$0xf]
    %v125 = vld [vmem:[%s1 + $0xf4] sm:$0xf]
    %v126 = vld [vmem:[%s1 + $0xf8] sm:$0xf]
    %v127 = vld [vmem:[%s1 + $0xfc] sm:$0xf]
    %v128 = vld [vmem:[%s1 + $0x100] sm:$0xf]
    %v129 = vld [vmem:[%s1 + $0x104] sm:$0xf]
    %v130 = vld [vmem:[%s1 + $0x108] sm:$0xf]
    %v131 = vld [vmem:[%s1 + $0x10c] sm:$0xf]
    %v132 = vld [vmem:[%s1 + $0x110] sm:$0xf]
    %v133 = vld [vmem:[%s1 + $0x114] sm:$0xf]
    %v134 = vld [vmem:[%s1 + $0x118] sm:$0xf]
    %v135 = vld [vmem:[%s1 + $0x11c] sm:$0xf]
    %v136 = vld [vmem:[%s1 + $0x120] sm:$0xf]
    %v137 = vld [vmem:[%s1 + $0x124] sm:$0xf]
    %v138 = vld [vmem:[%s1 + $0x128] sm:$0xf]
    %v139 = vld [vmem:[%s1 + $0x12c] sm:$0xf]
    %v140 = vld [vmem:[%s1 + $0x130] sm:$0xf]
    %v141 = vld [vmem:[%s1 + $0x134] sm:$0xf]
    %v142 = vld [vmem:[%s1 + $0x138] sm:$0xf]
    %v143 = vld [vmem:[%s1 + $0x13c] sm:$0xf]
    %v144 = vld [vmem:[%s1 + $0x140] sm:$0xf]
    %v145 = vld [vmem:[%s1 + $0x144] sm:$0xf]
    %v146 = vld [vmem:[%s1 + $0x148] sm:$0xf]
    %v147 = vld [vmem:[%s1 + $0x14c] sm:$0xf]
    %v148 = vld [vmem:[%s1 + $0x150] sm:$0xf]
    %v149 = vld [vmem:[%s1 + $0x154] sm:$0xf]
    %v150 = vld [vmem:[%s1 + $0x158] sm:$0xf]
    %v151 = vld [vmem:[%s1 + $0x15c] sm:$0xf]
    %v152 = vld [vmem:[%s1 + $0x160] sm:$0xf]
    %v153 = vld [vmem:[%s1 + $0x164] sm:$0xf]
    %v154 = vld [vmem:[%s1 + $0x168] sm:$0xf]
    %v155 = vld [vmem:[%s1 + $0x16c] sm:$0xf]
    %v156 = vld [vmem:[%s1 + $0x170] sm:$0xf]
    %v157 = vld [vmem:[%s1 + $0x174] sm:$0xf]
    %v158 = vld [vmem:[%s1 + $0x178] sm:$0xf]
    %v159 = vld [vmem:[%s1 + $0x17c] sm:$0xf]
    %v160 = vld [vmem:[%s1 + $0x180] sm:$0xf]
    %v161 = vld [vmem:[%s1 + $0x184] sm:$0xf]
    %v260 = vunpack.c.l.b16 %v64
    %v261 = vunpack.c.l.b16 %v65
    %v262 = vunpack.c.l.b16 %v66
    %v263 = vunpack.c.l.b16 %v67
    %v264 = vunpack.c.l.b16 %v68
    %v265 = vunpack.c.l.b16 %v69
    %v266 = vunpack.c.l.b16 %v70
    %v267 = vunpack.c.l.b16 %v71
    %v268 = vunpack.c.l.b16 %v72
    %v269 = vunpack.c.l.b16 %v73
    %v270 = vunpack.c.l.b16 %v74
    %v271 = vunpack.c.l.b16 %v75
    %v272 = vunpack.c.l.b16 %v76
    %v273 = vunpack.c.l.b16 %v77
    %v274 = vunpack.c.l.b16 %v78
    %v275 = vunpack.c.l.b16 %v79
    %v276 = vunpack.c.l.b16 %v80
    %v277 = vunpack.c.l.b16 %v81
    %v278 = vunpack.c.l.b16 %v82
    %v279 = vunpack.c.l.b16 %v83
    %v280 = vunpack.c.l.b16 %v84
    %v281 = vunpack.c.l.b16 %v85
    %v282 = vunpack.c.l.b16 %v86
    %v283 = vunpack.c.l.b16 %v87
    %v284 = vunpack.c.l.b16 %v88
    %v285 = vunpack.c.l.b16 %v89
    %v286 = vunpack.c.l.b16 %v90
    %v287 = vunpack.c.l.b16 %v91
    %v288 = vunpack.c.l.b16 %v92
    %v289 = vunpack.c.l.b16 %v93
    %v290 = vunpack.c.l.b16 %v94
    %v291 = vunpack.c.l.b16 %v95
    %v292 = vunpack.c.l.b16 %v96
    %v293 = vunpack.c.l.b16 %v97
    %v294 = vunpack.c.l.b16 %v98
    %v295 = vunpack.c.l.b16 %v99
    %v296 = vunpack.c.l.b16 %v100
    %v297 = vunpack.c.l.b16 %v101
    %v298 = vunpack.c.l.b16 %v102
    %v299 = vunpack.c.l.b16 %v103
    %v300 = vunpack.c.l.b16 %v104
    %v301 = vunpack.c.l.b16 %v105
    %v302 = vunpack.c.l.b16 %v106
    %v303 = vunpack.c.l.b16 %v107
    %v304 = vunpack.c.l.b16 %v108
    %v305 = vunpack.c.l.b16 %v109
    %v306 = vunpack.c.l.b16 %v110
    %v307 = vunpack.c.l.b16 %v111
    %v308 = vunpack.c.l.b16 %v112
    %v309 = vunpack.c.l.b16 %v113
    %v310 = vunpack.c.l.b16 %v114
    %v311 = vunpack.c.l.b16 %v115
    %v312 = vunpack.c.l.b16 %v116
    %v313 = vunpack.c.l.b16 %v117
    %v314 = vunpack.c.l.b16 %v118
    %v315 = vunpack.c.l.b16 %v119
    %v316 = vunpack.c.l.b16 %v120
    %v317 = vunpack.c.l.b16 %v121
    %v318 = vunpack.c.l.b16 %v122
    %v319 = vunpack.c.l.b16 %v123
    %v320 = vunpack.c.l.b16 %v124
    %v321 = vunpack.c.l.b16 %v125
    %v322 = vunpack.c.l.b16 %v126
    %v323 = vunpack.c.l.b16 %v127
    %v324 = vunpack.c.l.b16 %v128
    %v325 = vunpack.c.l.b16 %v129
    %v326 = vunpack.c.l.b16 %v130
    %v327 = vunpack.c.l.b16 %v131
    %v328 = vunpack.c.l.b16 %v132
    %v329 = vunpack.c.l.b16 %v133
    %v330 = vunpack.c.l.b16 %v134
    %v331 = vunpack.c.l.b16 %v135
    %v332 = vunpack.c.l.b16 %v136
    %v333 = vunpack.c.l.b16 %v137
    %v334 = vunpack.c.l.b16 %v138
    %v335 = vunpack.c.l.b16 %v139
    %v336 = vunpack.c.l.b16 %v140
    %v337 = vunpack.c.l.b16 %v141
    %v338 = vunpack.c.l.b16 %v142
    %v339 = vunpack.c.l.b16 %v143
    %v340 = vunpack.c.l.b16 %v144
    %v341 = vunpack.c.l.b16 %v145
    %v342 = vunpack.c.l.b16 %v146
    %v343 = vunpack.c.l.b16 %v147
    %v344 = vunpack.c.l.b16 %v148
    %v345 = vunpack.c.l.b16 %v149
    %v346 = vunpack.c.l.b16 %v150
    %v347 = vunpack.c.l.b16 %v151
    %v348 = vunpack.c.l.b16 %v152
    %v349 = vunpack.c.l.b16 %v153
    %v350 = vunpack.c.l.b16 %v154
    %v351 = vunpack.c.l.b16 %v155
    %v352 = vunpack.c.l.b16 %v156
    %v353 = vunpack.c.l.b16 %v157
    %v354 = vunpack.c.l.b16 %v158
    %v355 = vunpack.c.l.b16 %v159
    %v356 = vunpack.c.l.b16 %v160
    %v357 = vunpack.c.l.b16 %v161
    %v358 = vpack.c.b16 %v261, %v260
    %v359 = vpack.c.b16 %v263, %v262
    %v360 = vpack.c.b16 %v265, %v264
    %v361 = vpack.c.b16 %v267, %v266
    %v362 = vpack.c.b16 %v269, %v268
    %v363 = vpack.c.b16 %v271, %v270
    %v364 = vpack.c.b16 %v273, %v272
    %v365 = vpack.c.b16 %v275, %v274
    %v366 = vpack.c.b16 %v277, %v276
    %v367 = vpack.c.b16 %v279, %v278
    %v368 = vpack.c.b16 %v281, %v280
    %v369 = vpack.c.b16 %v283, %v282
    %v370 = vpack.c.b16 %v285, %v284
    %v371 = vpack.c.b16 %v287, %v286
    %v372 = vpack.c.b16 %v289, %v288
    %v373 = vpack.c.b16 %v291, %v290
    %v374 = vpack.c.b16 %v293, %v292
    %v375 = vpack.c.b16 %v295, %v294
    %v376 = vpack.c.b16 %v297, %v296
    %v377 = vpack.c.b16 %v299, %v298
    %v378 = vpack.c.b16 %v301, %v300
    %v379 = vpack.c.b16 %v303, %v302
    %v380 = vpack.c.b16 %v305, %v304
    %v381 = vpack.c.b16 %v307, %v306
    %v382 = vpack.c.b16 %v309, %v308
    %v383 = vpack.c.b16 %v311, %v310
    %v384 = vpack.c.b16 %v313, %v312
    %v385 = vpack.c.b16 %v315, %v314
    %v386 = vpack.c.b16 %v317, %v316
    %v387 = vpack.c.b16 %v319, %v318
    %v388 = vpack.c.b16 %v321, %v320
    %v389 = vpack.c.b16 %v323, %v322
    %v390 = vpack.c.b16 %v325, %v324
    %v391 = vpack.c.b16 %v327, %v326
    %v392 = vpack.c.b16 %v329, %v328
    %v393 = vpack.c.b16 %v331, %v330
    %v394 = vpack.c.b16 %v333, %v332
    %v395 = vpack.c.b16 %v335, %v334
    %v396 = vpack.c.b16 %v337, %v336
    %v397 = vpack.c.b16 %v339, %v338
    %v398 = vpack.c.b16 %v341, %v340
    %v399 = vpack.c.b16 %v343, %v342
    %v400 = vpack.c.b16 %v345, %v344
    %v401 = vpack.c.b16 %v347, %v346
    %v402 = vpack.c.b16 %v349, %v348
    %v403 = vpack.c.b16 %v351, %v350
    %v404 = vpack.c.b16 %v353, %v352
    %v405 = vpack.c.b16 %v355, %v354
    %v406 = vpack.c.b16 %v357, %v356
    %vm456 = vcmask 130048
    %v458 = vsel %vm456, %v63, 0
    %460 = vmatprep.subr.bf16.mxu0 0
    %461 = vmatpush1.bf16.msra.mxu0 %v365
    %462 = vmatprep.subr.bf16.mxu0 0
    %463 = vmatpush1.bf16.msra.mxu0 %v364
    %464 = vmatprep.subr.bf16.mxu0 0
    %465 = vmatpush1.bf16.msra.mxu0 %v363
    %466 = vmatprep.subr.bf16.mxu0 0
    %467 = vmatpush1.bf16.msra.mxu0 %v362
    %468 = vmatprep.subr.bf16.mxu0 0
    %469 = vmatpush1.bf16.msra.mxu0 %v361
    %470 = vmatprep.subr.bf16.mxu0 0
    %471 = vmatpush1.bf16.msra.mxu0 %v360
    %472 = vmatprep.subr.bf16.mxu0 0
    %473 = vmatpush1.bf16.msra.mxu0 %v359
    %474 = vmatprep.subr.bf16.mxu0 0
    %475 = vmatpush1.bf16.msra.mxu0 %v358
    %476 = vmatprep.subr.bf16.mxu0 0
    %477 = vmatpush2.bf16.msra.mxu0 %v373
    %478 = vmatprep.subr.bf16.mxu0 0
    %479 = vmatpush2.bf16.msra.mxu0 %v372
    %480 = vmatprep.subr.bf16.mxu0 0
    %481 = vmatpush2.bf16.msra.mxu0 %v371
    %482 = vmatprep.subr.bf16.mxu0 0
    %483 = vmatpush2.bf16.msra.mxu0 %v370
    %484 = vmatprep.subr.bf16.mxu0 0
    %485 = vmatpush2.bf16.msra.mxu0 %v369
    %486 = vmatprep.subr.bf16.mxu0 0
    %487 = vmatpush2.bf16.msra.mxu0 %v368
    %488 = vmatprep.subr.bf16.mxu0 0
    %489 = vmatpush2.bf16.msra.mxu0 %v367
    %490 = vmatprep.subr.bf16.mxu0 0
    %491 = vmatpush2.bf16.msra.mxu0 %v366
    %492 = vmatprep.mubr.bf16.mxu0 %v58
    %493 = vmatmul.mubr.bf16.gmra.mxu0 %v57
    %v494 = vpop.f32.mrf.mxu0
    %v495 = vadd.f32 0.0, %v494
    %v496 = vpop.f32.mrf.mxu0
    %v497 = vpop.f32.mrf.mxu0
    %v498 = vpop.f32.mrf.mxu0
    %499 = vdwg.mxu0
    %500 = vmatprep.subr.bf16.mxu0 0
    %501 = vmatpush1.bf16.msra.mxu0 %v381
    %502 = vmatprep.subr.bf16.mxu0 0
    %503 = vmatpush1.bf16.msra.mxu0 %v380
    %504 = vmatprep.subr.bf16.mxu0 0
    %505 = vmatpush1.bf16.msra.mxu0 %v379
    %506 = vmatprep.subr.bf16.mxu0 0
    %507 = vmatpush1.bf16.msra.mxu0 %v378
    %508 = vmatprep.subr.bf16.mxu0 0
    %509 = vmatpush1.bf16.msra.mxu0 %v377
    %510 = vmatprep.subr.bf16.mxu0 0
    %511 = vmatpush1.bf16.msra.mxu0 %v376
    %512 = vmatprep.subr.bf16.mxu0 0
    %513 = vmatpush1.bf16.msra.mxu0 %v375
    %514 = vmatprep.subr.bf16.mxu0 0
    %515 = vmatpush1.bf16.msra.mxu0 %v374
    %516 = vmatprep.subr.bf16.mxu0 0
    %517 = vmatpush2.bf16.msra.mxu0 %v389
    %518 = vmatprep.subr.bf16.mxu0 0
    %519 = vmatpush2.bf16.msra.mxu0 %v388
    %520 = vmatprep.subr.bf16.mxu0 0
    %521 = vmatpush2.bf16.msra.mxu0 %v387
    %522 = vmatprep.subr.bf16.mxu0 0
    %523 = vmatpush2.bf16.msra.mxu0 %v386
    %524 = vmatprep.subr.bf16.mxu0 0
    %525 = vmatpush2.bf16.msra.mxu0 %v385
    %526 = vmatprep.subr.bf16.mxu0 0
    %527 = vmatpush2.bf16.msra.mxu0 %v384
    %528 = vmatprep.subr.bf16.mxu0 0
    %529 = vmatpush2.bf16.msra.mxu0 %v383
    %530 = vmatprep.subr.bf16.mxu0 0
    %531 = vmatpush2.bf16.msra.mxu0 %v382
    %532 = vmatprep.mubr.bf16.mxu0 %v60
    %533 = vmatmul.mubr.bf16.gmra.mxu0 %v59
    %v534 = vpop.f32.mrf.mxu0
    %v535 = vadd.f32 %v495, %v534
    %v536 = vpop.f32.mrf.mxu0
    %v537 = vpop.f32.mrf.mxu0
    %v538 = vpop.f32.mrf.mxu0
    %539 = vdwg.mxu0
    %540 = vmatprep.subr.bf16.mxu0 0
    %541 = vmatpush1.bf16.msra.mxu0 %v397
    %542 = vmatprep.subr.bf16.mxu0 0
    %543 = vmatpush1.bf16.msra.mxu0 %v396
    %544 = vmatprep.subr.bf16.mxu0 0
    %545 = vmatpush1.bf16.msra.mxu0 %v395
    %546 = vmatprep.subr.bf16.mxu0 0
    %547 = vmatpush1.bf16.msra.mxu0 %v394
    %548 = vmatprep.subr.bf16.mxu0 0
    %549 = vmatpush1.bf16.msra.mxu0 %v393
    %550 = vmatprep.subr.bf16.mxu0 0
    %551 = vmatpush1.bf16.msra.mxu0 %v392
    %552 = vmatprep.subr.bf16.mxu0 0
    %553 = vmatpush1.bf16.msra.mxu0 %v391
    %554 = vmatprep.subr.bf16.mxu0 0
    %555 = vmatpush1.bf16.msra.mxu0 %v390
    %556 = vmatprep.subr.bf16.mxu0 0
    %557 = vmatpush2.bf16.msra.mxu0 %v405
    %558 = vmatprep.subr.bf16.mxu0 0
    %559 = vmatpush2.bf16.msra.mxu0 %v404
    %560 = vmatprep.subr.bf16.mxu0 0
    %561 = vmatpush2.bf16.msra.mxu0 %v403
    %562 = vmatprep.subr.bf16.mxu0 0
    %563 = vmatpush2.bf16.msra.mxu0 %v402
    %564 = vmatprep.subr.bf16.mxu0 0
    %565 = vmatpush2.bf16.msra.mxu0 %v401
    %566 = vmatprep.subr.bf16.mxu0 0
    %567 = vmatpush2.bf16.msra.mxu0 %v400
    %568 = vmatprep.subr.bf16.mxu0 0
    %569 = vmatpush2.bf16.msra.mxu0 %v399
    %570 = vmatprep.subr.bf16.mxu0 0
    %571 = vmatpush2.bf16.msra.mxu0 %v398
    %572 = vmatprep.mubr.bf16.mxu0 %v62
    %573 = vmatmul.mubr.bf16.gmra.mxu0 %v61
    %v574 = vpop.f32.mrf.mxu0
    %v575 = vadd.f32 %v535, %v574
    %v576 = vpop.f32.mrf.mxu0
    %v577 = vpop.f32.mrf.mxu0
    %v578 = vpop.f32.mrf.mxu0
    %579 = vdwg.mxu0
    %580 = vmatprep.subr.bf16.mxu0 0
    %581 = vmatpush1.bf16.msra.mxu0 0
    %582 = vmatprep.subr.bf16.mxu0 0
    %583 = vmatpush1.bf16.msra.mxu0 0
    %584 = vmatprep.subr.bf16.mxu0 0
    %585 = vmatpush1.bf16.msra.mxu0 0
    %586 = vmatprep.subr.bf16.mxu0 0
    %587 = vmatpush1.bf16.msra.mxu0 0
    %588 = vmatprep.subr.bf16.mxu0 0
    %589 = vmatpush1.bf16.msra.mxu0 0
    %590 = vmatprep.subr.bf16.mxu0 0
    %591 = vmatpush1.bf16.msra.mxu0 0
    %592 = vmatprep.subr.bf16.mxu0 0
    %593 = vmatpush1.bf16.msra.mxu0 0
    %594 = vmatprep.subr.bf16.mxu0 0
    %595 = vmatpush1.bf16.msra.mxu0 %v406
    %596 = vmatprep.subr.bf16.mxu0 0
    %597 = vmatpush2.bf16.msra.mxu0 0
    %598 = vmatprep.subr.bf16.mxu0 0
    %599 = vmatpush2.bf16.msra.mxu0 0
    %600 = vmatprep.subr.bf16.mxu0 0
    %601 = vmatpush2.bf16.msra.mxu0 0
    %602 = vmatprep.subr.bf16.mxu0 0
    %603 = vmatpush2.bf16.msra.mxu0 0
    %604 = vmatprep.subr.bf16.mxu0 0
    %605 = vmatpush2.bf16.msra.mxu0 0
    %606 = vmatprep.subr.bf16.mxu0 0
    %607 = vmatpush2.bf16.msra.mxu0 0
    %608 = vmatprep.subr.bf16.mxu0 0
    %609 = vmatpush2.bf16.msra.mxu0 0
    %610 = vmatprep.subr.bf16.mxu0 0
    %611 = vmatpush2.bf16.msra.mxu0 0
    %612 = vmatprep.mubr.bf16.mxu0 0
    %613 = vmatmul.mubr.bf16.gmra.mxu0 %v458
    %v614 = vpop.f32.mrf.mxu0
    %v615 = vadd.f32 %v575, %v614
    %v616 = vpop.f32.mrf.mxu0
    %v617 = vpop.f32.mrf.mxu0
    %v618 = vpop.f32.mrf.mxu0
    %619 = vdwg.mxu0
    %v620 = vmax.f32 %v615, 0.0
    %vm621 = vcmask 74752
    %622 = vst.msk [vmem:[#allocation2] sm:$0x3] %vm621, %v620
    // Predicated region
    $region10: #{tpu_custom_call.1} parent=1 // pred_check
      _
    $region11: #{tpu_custom_call.1} parent=1 // pred_check_branch
      %624 = sbr.rel (0) target = $region13
    $region12: #{tpu_custom_call.1} parent=1 // pred_region
      %s626 = ssub.s32 32, 32
      %627 = vsyncadd [#allocation3], %s626
      %s629 = sshll.u32 [#allocation2], 4
      %s630 = int_to_ptr.vmem [resolvable:$true] %s629
      %632 = dma.vmem_to_hbm [thread:$0]  %s630, 32, %s2, [#allocation3]
    $region13: #{tpu_custom_call.1} parent=1 // pred_fallthru
      _
    // Predicated region
    $region14: #{tpu_custom_call.1} parent=1 // pred_check
      _
    $region15: #{tpu_custom_call.1} parent=1 // pred_check_branch
      %634 = sbr.rel (0) target = $region17
    $region16: #{tpu_custom_call.1} parent=1 // pred_region
      %635 = dma.done [#allocation3], 32
    $region17: #{tpu_custom_call.1} parent=1 // pred_fallthru
      _
    %636 = vsyncpa [#allocation3], 1

</llo_original>
